<compile_context>
chip_gen: v7x
topology: tpu7x:2x2x1
jax: 0.10.0
libtpu: 0.0.40
codegen_flags: <defaults>
</compile_context>

<pallas_src>
import functools

import jax
import jax.numpy as jnp
from jax.experimental import pallas as pl
from jax.experimental.pallas import tpu as pltpu


_SOFT_BLOCK_BYTES = 4 * 1024 * 1024  # ~2-4 MiB blocks already reach HBM roofline


# --------------------------------------------------------------------------
# Kernels
# --------------------------------------------------------------------------
def _cbn_single_pass_kernel(x_ref, w_ref, b_ref, o_ref, *, eps, inv_count):
    # x_ref / o_ref: (N, tc, L), real/imag interleaved on lanes.
    # w_ref / b_ref: (tc, 2) with col 0 = real part, col 1 = imag part.
    x = x_ref[...].astype(jnp.float32)                   # (N, tc, L)
    L = x.shape[-1]

    # Accumulate over the batch axis first (cheap VALU adds), THEN mask/reduce
    # the (tc, L) partials -> no full-size masked temporaries, XLU volume / N.
    acc = jnp.sum(x, axis=0)                             # (tc, L)
    acc_sq = jnp.sum(x * x, axis=0)                      # (tc, L)

    lane = jax.lax.broadcasted_iota(jnp.int32, (1, L), 1)
    is_re = (lane % 2) == 0                              # (1, L)

    sum_all = jnp.sum(acc, axis=-1, keepdims=True)       # (tc, 1)
    sum_re = jnp.sum(jnp.where(is_re, acc, 0.0), axis=-1, keepdims=True)
    ssq_all = jnp.sum(acc_sq, axis=-1, keepdims=True)
    ssq_re = jnp.sum(jnp.where(is_re, acc_sq, 0.0), axis=-1, keepdims=True)

    mean_re = sum_re * inv_count
    mean_im = (sum_all - sum_re) * inv_count
    # Biased variance via E[x^2] - mean^2 keeps the statistics single-pass;
    # clamp against cancellation round-off.
    # TODO(synk): inputs with |mean| >> std would want a centered (two-pass)
    # variance to match PyTorch bit-for-bit; not done here to keep x read-once.
    var_re = jnp.maximum(ssq_re * inv_count - mean_re * mean_re, 0.0)
    var_im = jnp.maximum((ssq_all - ssq_re) * inv_count - mean_im * mean_im, 0.0)

    w = w_ref[...].astype(jnp.float32)                   # (tc, 2)
    b = b_ref[...].astype(jnp.float32)
    scale_re = jax.lax.rsqrt(var_re + eps) * w[:, 0:1]   # (tc, 1)
    scale_im = jax.lax.rsqrt(var_im + eps) * w[:, 1:2]
    shift_re = b[:, 0:1] - mean_re * scale_re
    shift_im = b[:, 1:2] - mean_im * scale_im

    is_re3 = is_re[None]                                 # (1, 1, L)
    scale = jnp.where(is_re3, scale_re[None], scale_im[None])   # (1, tc, L)
    shift = jnp.where(is_re3, shift_re[None], shift_im[None])
    o_ref[...] = (x * scale + shift).astype(o_ref.dtype)


def _stats_kernel(x_ref, sr_ref, si_ref, qr_ref, qi_ref):
    # Two-pass fallback, pass 1: accumulate per-(channel, parity) sum / sum-sq.
    # Grid = (C_tiles, N_tiles, L_tiles); N/L are reduction axes (last).
    first = jnp.logical_and(pl.program_id(1) == 0, pl.program_id(2) == 0)

    @pl.when(first)
    def _():
        sr_ref[...] = jnp.zeros_like(sr_ref)
        si_ref[...] = jnp.zeros_like(si_ref)
        qr_ref[...] = jnp.zeros_like(qr_ref)
        qi_ref[...] = jnp.zeros_like(qi_ref)

    x = x_ref[...].astype(jnp.float32)                   # (tn, tc, tl)
    acc = jnp.sum(x, axis=0)                             # (tc, tl)
    acc_sq = jnp.sum(x * x, axis=0)

    tl = acc.shape[-1]
    lane = jax.lax.broadcasted_iota(jnp.int32, (1, tl), 1)
    is_re = (lane % 2) == 0

    sr_ref[...] += jnp.sum(jnp.where(is_re, acc, 0.0), axis=-1, keepdims=True)
    si_ref[...] += jnp.sum(jnp.where(is_re, 0.0, acc), axis=-1, keepdims=True)
    qr_ref[...] += jnp.sum(jnp.where(is_re, acc_sq, 0.0), axis=-1, keepdims=True)
    qi_ref[...] += jnp.sum(jnp.where(is_re, 0.0, acc_sq), axis=-1, keepdims=True)


def _normalize_kernel(x_ref, scale_ref, shift_ref, o_ref):
    # Two-pass fallback, pass 2: y = x * scale + shift, selected by lane parity.
    x = x_ref[...].astype(jnp.float32)                   # (tn, tc, tl)
    tl = x.shape[-1]
    lane = jax.lax.broadcasted_iota(jnp.int32, (1, 1, tl), 2)
    is_re = (lane % 2) == 0
    sc = scale_ref[...].astype(jnp.float32)[None]        # (1, tc, 2)
    sh = shift_ref[...].astype(jnp.float32)[None]
    scale = jnp.where(is_re, sc[..., 0:1], sc[..., 1:2])
    shift = jnp.where(is_re, sh[..., 0:1], sh[..., 1:2])
    o_ref[...] = (x * scale + shift).astype(o_ref.dtype)


# --------------------------------------------------------------------------
# Planning helpers (VMEM-, dtype- and generation-aware tiling)
# --------------------------------------------------------------------------
def _sublane(itemsize):
    return {4: 8, 2: 16, 1: 32}.get(int(itemsize), 8)


def _vmem_limits():
    try:
        cap = int(pltpu.get_tpu_info().vmem_capacity_bytes)
    except Exception:
        cap = 64 * 1024 * 1024  # conservative (v7x per-core VMEM)
    # 32 MiB on v7x (64 MiB physical), 64 MiB on v5e/v6e (128 MiB physical).
    vmem_limit = min(cap // 2, 96 * 1024 * 1024)
    budget = int(vmem_limit * 0.6)  # leave headroom for compiler temps
    return vmem_limit, budget


def _plan_single_pass(C, N, L, dtype, budget_bytes, target_grid=8):
    """Pick a channel tile tc for the single-pass kernel, or None if it can't fit."""
    itemsize = jnp.dtype(dtype).itemsize
    sub = _sublane(itemsize)
    # Double-buffered in + out (input dtype) plus ~3 block-sized f32 temporaries
    # (the in-kernel f32 upcast is counted even for bf16/int8 inputs).
    per_chan = N * L * (4 * itemsize + 3 * 4)
    min_tc = C if C < sub else sub
    if min_tc * per_chan > budget_bytes:
        return None  # minimal legal block exceeds the VMEM budget -> two-pass
    if C <= sub:
        return int(C), 1  # full-C block is the only legal (and tiny) option
    tc_budget = (budget_bytes // per_chan) // sub * sub           # hard VMEM cap
    tc_soft = max(sub, (_SOFT_BLOCK_BYTES // per_chan) // sub * sub)  # roofline cap
    tc_grid = max(sub, (C // target_grid) // sub * sub)           # >= 8 grid steps
    tc = max(sub, min(tc_budget, tc_soft, tc_grid))
    grid = int(pl.cdiv(C, tc))  # tail tile may run out of bounds: safe (see notes)
    return int(tc), grid


def _plan_two_pass(C, N, L, dtype, budget_bytes):
    """Tiles (tn, tc, tl) for the two-pass (stats + normalize) fallback."""
    itemsize = jnp.dtype(dtype).itemsize
    sub = _sublane(itemsize)
    tc = C if C < sub else sub
    per_elem = 4 * itemsize + 3 * 4
    cap = min(budget_bytes, _SOFT_BLOCK_BYTES)
    # Lane tile: divisor of L that is a multiple of 128 (keeps lane density and
    # real/imag parity alignment), or full L.  Exact division is required so the
    # reduction never sums out-of-bounds garbage.
    tl_cands = [d for d in range(128, L + 1, 128) if L % d == 0]
    if not tl_cands:
        tl_cands = [L]
    tl_fit = [t for t in tl_cands if tc * t * per_elem <= cap]
    tl = max(tl_fit) if tl_fit else min(tl_cands)
    # Batch tile: divisor of N (exact division, same reason).
    tn_cands = [d for d in range(1, N + 1) if N % d == 0]
    tn_fit = [d for d in tn_cands if d * tc * tl * per_elem <= cap]
    tn = max(tn_fit) if tn_fit else 1
    # TODO(synk): if even (1, tc_min, 128) exceeds VMEM (enormous, awkward H*W),
    # a masked ragged lane tile would be needed; not implemented.
    return int(tn), int(tc), int(tl)


# --------------------------------------------------------------------------
# Wrapper
# --------------------------------------------------------------------------
def complex_batchnorm2d(x, w_re, b_re, w_im, b_im, *, eps=1e-5,
                        vmem_budget_bytes=None):
    """x: (N, C, H, W, 2) -> same shape/dtype (training-mode forward)."""
    N, C, H, W, two = x.shape
    assert two == 2
    L = H * W * 2
    count = N * H * W
    # TODO(synk): running_mean / running_var (momentum, unbiased variance)
    # buffer updates are training-time side effects not returned here.
    # TODO(synk): if L is not a multiple of 128 (tiny feature maps) the output
    # stores become masked partial stores; padding H*W would restore lane
    # density for such shapes.

    x3 = x.reshape(N, C, L)  # free reshape, no data movement
    vmem_limit, auto_budget = _vmem_limits()
    budget = auto_budget if vmem_budget_bytes is None else int(vmem_budget_bytes)

    plan = _plan_single_pass(C, N, L, x.dtype, budget)
    if plan is not None:
        tc, grid_c = plan
        w = jnp.stack([w_re, w_im], axis=-1).astype(jnp.float32)  # (C, 2)
        b = jnp.stack([b_re, b_im], axis=-1).astype(jnp.float32)
        kernel = functools.partial(_cbn_single_pass_kernel,
                                   eps=float(eps), inv_count=1.0 / count)
        out = pl.pallas_call(
            kernel,
            out_shape=jax.ShapeDtypeStruct((N, C, L), x.dtype),
            grid_spec=pltpu.PrefetchScalarGridSpec(
                num_scalar_prefetch=0,
                grid=(grid_c,),
                in_specs=[
                    pl.BlockSpec((N, tc, L), lambda c: (0, c, 0)),
                    pl.BlockSpec((tc, 2), lambda c: (c, 0)),
                    pl.BlockSpec((tc, 2), lambda c: (c, 0)),
                ],
                out_specs=pl.BlockSpec((N, tc, L), lambda c: (0, c, 0)),
            ),
            compiler_params=pltpu.CompilerParams(
                dimension_semantics=("parallel",),
                vmem_limit_bytes=vmem_limit,
            ),
        )(x3, w, b)
        return out.reshape(N, C, H, W, 2)

    # ---------------- Two-pass fallback (large N*H*W) ----------------------
    tn, tc, tl = _plan_two_pass(C, N, L, x.dtype, budget)
    grid = (int(pl.cdiv(C, tc)), N // tn, L // tl)

    stats = pl.pallas_call(
        _stats_kernel,
        out_shape=tuple(jax.ShapeDtypeStruct((C, 1), jnp.float32) for _ in range(4)),
        grid_spec=pltpu.PrefetchScalarGridSpec(
            num_scalar_prefetch=0,
            grid=grid,
            in_specs=[pl.BlockSpec((tn, tc, tl), lambda c, n, l: (n, c, l))],
            out_specs=tuple(
                pl.BlockSpec((tc, 1), lambda c, n, l: (c, 0)) for _ in range(4)),
        ),
        compiler_params=pltpu.CompilerParams(
            dimension_semantics=("parallel", "arbitrary", "arbitrary"),
            vmem_limit_bytes=vmem_limit,
        ),
    )(x3)
    sum_re, sum_im, ssq_re, ssq_im = stats

    inv_count = 1.0 / count
    mean_re = sum_re[:, 0] * inv_count
    mean_im = sum_im[:, 0] * inv_count
    var_re = jnp.maximum(ssq_re[:, 0] * inv_count - mean_re * mean_re, 0.0)
    var_im = jnp.maximum(ssq_im[:, 0] * inv_count - mean_im * mean_im, 0.0)
    sc_re = jax.lax.rsqrt(var_re + eps) * w_re.astype(jnp.float32)
    sc_im = jax.lax.rsqrt(var_im + eps) * w_im.astype(jnp.float32)
    sh_re = b_re.astype(jnp.float32) - mean_re * sc_re
    sh_im = b_im.astype(jnp.float32) - mean_im * sc_im
    scale = jnp.stack([sc_re, sc_im], axis=-1)   # (C, 2)
    shift = jnp.stack([sh_re, sh_im], axis=-1)   # (C, 2)

    out = pl.pallas_call(
        _normalize_kernel,
        out_shape=jax.ShapeDtypeStruct((N, C, L), x.dtype),
        grid_spec=pltpu.PrefetchScalarGridSpec(
            num_scalar_prefetch=0,
            grid=grid,
            in_specs=[
                pl.BlockSpec((tn, tc, tl), lambda c, n, l: (n, c, l)),
                pl.BlockSpec((tc, 2), lambda c, n, l: (c, 0)),
                pl.BlockSpec((tc, 2), lambda c, n, l: (c, 0)),
            ],
            out_specs=pl.BlockSpec((tn, tc, tl), lambda c, n, l: (n, c, l)),
        ),
        compiler_params=pltpu.CompilerParams(
            dimension_semantics=("parallel", "parallel", "parallel"),
            vmem_limit_bytes=vmem_limit,
        ),
    )(x3, scale, shift)
    return out.reshape(N, C, H, W, 2)


# --------------------------------------------------------------------------
# Reference + demo
# --------------------------------------------------------------------------
def _reference(x, w_re, b_re, w_im, b_im, eps=1e-5):
    def bn(part, w, bias):
        mean = jnp.mean(part, axis=(0, 2, 3), keepdims=True)
        var = jnp.mean((part - mean) ** 2, axis=(0, 2, 3), keepdims=True)
        xn = (part - mean) / jnp.sqrt(var + eps)
        return xn * w.reshape(1, -1, 1, 1) + bias.reshape(1, -1, 1, 1)

    real = bn(x[..., 0], w_re, b_re)
    imag = bn(x[..., 1], w_im, b_im)
    return jnp.stack([real, imag], axis=-1)


if __name__ == "__main__":
    key = jax.random.PRNGKey(0)
    k_x, k_wr, k_br, k_wi, k_bi = jax.random.split(key, 5)

    N, C, H, W = 2, 4, 16, 16
    x = jax.random.normal(k_x, (N, C, H, W, 2), dtype=jnp.float32)

    # PyTorch default init is weight=1, bias=0; use non-trivial deterministic
    # values to exercise the affine path.
    w_re = 1.0 + 0.1 * jax.random.normal(k_wr, (C,), dtype=jnp.float32)
    b_re = 0.1 * jax.random.normal(k_br, (C,), dtype=jnp.float32)
    w_im = 1.0 + 0.1 * jax.random.normal(k_wi, (C,), dtype=jnp.float32)
    b_im = 0.1 * jax.random.normal(k_bi, (C,), dtype=jnp.float32)

    ref = _reference(x, w_re, b_re, w_im, b_im, eps=1e-5)

    # Single-pass path (auto VMEM budget).
    out = jax.block_until_ready(
        complex_batchnorm2d(x, w_re, b_re, w_im, b_im, eps=1e-5))
    assert out.shape == (N, C, H, W, 2)
    assert jnp.allclose(out, ref, atol=2e-5, rtol=2e-5)

    # Force the two-pass (stats + normalize) fallback with a tiny budget so the
    # large-N*H*W path is also exercised and validated.
    out2 = jax.block_until_ready(
        complex_batchnorm2d(x, w_re, b_re, w_im, b_im, eps=1e-5,
                            vmem_budget_bytes=64 * 1024))
    assert out2.shape == (N, C, H, W, 2)
    assert jnp.allclose(out2, ref, atol=2e-5, rtol=2e-5)

    print("KERNEL_OK")
</pallas_src>

<mosaic_0001>
module attributes {stable_mosaic.version = 11 : i64} {
  func.func @_cbn_single_pass_kernel(%arg0: i32, %arg1: memref<2x4x512xf32, #tpu.memory_space<vmem>>, %arg2: memref<4x2xf32, #tpu.memory_space<vmem>>, %arg3: memref<4x2xf32, #tpu.memory_space<vmem>>, %arg4: memref<2x4x512xf32, #tpu.memory_space<vmem>>) attributes {dimension_semantics = [#tpu.dimension_semantics<parallel>], iteration_bounds = array<i64: 1>, scalar_prefetch = 0 : i64, scratch_operands = 0 : i64, tpu.core_type = #tpu.core_type<tc>, window_params = [{transform_indices = @transform_0, window_bounds = array<i64: 2, 4, 512>}, {transform_indices = @transform_1, window_bounds = array<i64: 4, 2>}, {transform_indices = @transform_2, window_bounds = array<i64: 4, 2>}, {transform_indices = @transform_3, window_bounds = array<i64: 2, 4, 512>}]} {
    %c0 = arith.constant 0 : index
    %c0_0 = arith.constant 0 : index
    %c0_1 = arith.constant 0 : index
    %0 = vector.load %arg1[%c0, %c0_0, %c0_1] : memref<2x4x512xf32, #tpu.memory_space<vmem>>, vector<2x4x512xf32>
    %cst = arith.constant dense<0.000000e+00> : vector<4x512xf32>
    %1 = vector.multi_reduction <add>, %0, %cst [0] : vector<2x4x512xf32> to vector<4x512xf32>
    %2 = arith.mulf %0, %0 : vector<2x4x512xf32>
    %cst_2 = arith.constant dense<0.000000e+00> : vector<4x512xf32>
    %3 = vector.multi_reduction <add>, %2, %cst_2 [0] : vector<2x4x512xf32> to vector<4x512xf32>
    %4 = tpu.iota {dimensions = array<i32: 1>} : vector<1x512xi32>
    %c2_i32 = arith.constant 2 : i32
    %c0_i32 = arith.constant 0 : i32
    %5 = arith.cmpi eq, %c2_i32, %c0_i32 : i32
    %c1_i32 = arith.constant 1 : i32
    %6 = arith.select %5, %c1_i32, %c2_i32 : i32
    %7 = vector.broadcast %6 : i32 to vector<1x512xi32>
    %8 = arith.remsi %4, %7 : vector<1x512xi32>
    %c0_i32_3 = arith.constant 0 : i32
    %9 = vector.broadcast %c0_i32_3 : i32 to vector<1x512xi32>
    %10 = arith.cmpi ne, %8, %9 : vector<1x512xi32>
    %c0_i32_4 = arith.constant 0 : i32
    %11 = vector.broadcast %c0_i32_4 : i32 to vector<1x512xi32>
    %12 = arith.cmpi slt, %8, %11 : vector<1x512xi32>
    %c0_i32_5 = arith.constant 0 : i32
    %13 = arith.cmpi slt, %6, %c0_i32_5 : i32
    %14 = vector.broadcast %13 : i1 to vector<1x512xi1>
    %15 = vector.broadcast %14 : vector<1x512xi1> to vector<1x512xi1>
    %16 = arith.xori %12, %15 : vector<1x512xi1>
    %17 = arith.andi %16, %10 : vector<1x512xi1>
    %18 = vector.broadcast %6 : i32 to vector<1x512xi32>
    %19 = arith.addi %8, %18 : vector<1x512xi32>
    %20 = arith.select %17, %19, %8 : vector<1x512xi1>, vector<1x512xi32>
    %c0_i32_6 = arith.constant 0 : i32
    %21 = vector.broadcast %c0_i32_6 : i32 to vector<1x512xi32>
    %22 = arith.cmpi eq, %20, %21 : vector<1x512xi32>
    %cst_7 = arith.constant dense<0.000000e+00> : vector<4xf32>
    %23 = vector.multi_reduction <add>, %1, %cst_7 [1] : vector<4x512xf32> to vector<4xf32>
    %24 = vector.shape_cast %23 : vector<4xf32> to vector<4x1xf32>
    %cst_8 = arith.constant 0.000000e+00 : f32
    %25 = vector.shape_cast %22 : vector<1x512xi1> to vector<1x512xi1>
    %26 = vector.broadcast %25 : vector<1x512xi1> to vector<4x512xi1>
    %27 = vector.broadcast %cst_8 : f32 to vector<4x512xf32>
    %28 = arith.select %26, %1, %27 : vector<4x512xi1>, vector<4x512xf32>
    %cst_9 = arith.constant dense<0.000000e+00> : vector<4xf32>
    %29 = vector.multi_reduction <add>, %28, %cst_9 [1] : vector<4x512xf32> to vector<4xf32>
    %30 = vector.shape_cast %29 : vector<4xf32> to vector<4x1xf32>
    %cst_10 = arith.constant dense<0.000000e+00> : vector<4xf32>
    %31 = vector.multi_reduction <add>, %3, %cst_10 [1] : vector<4x512xf32> to vector<4xf32>
    %32 = vector.shape_cast %31 : vector<4xf32> to vector<4x1xf32>
    %cst_11 = arith.constant 0.000000e+00 : f32
    %33 = vector.shape_cast %22 : vector<1x512xi1> to vector<1x512xi1>
    %34 = vector.broadcast %33 : vector<1x512xi1> to vector<4x512xi1>
    %35 = vector.broadcast %cst_11 : f32 to vector<4x512xf32>
    %36 = arith.select %34, %3, %35 : vector<4x512xi1>, vector<4x512xf32>
    %cst_12 = arith.constant dense<0.000000e+00> : vector<4xf32>
    %37 = vector.multi_reduction <add>, %36, %cst_12 [1] : vector<4x512xf32> to vector<4xf32>
    %38 = vector.shape_cast %37 : vector<4xf32> to vector<4x1xf32>
    %cst_13 = arith.constant 0.001953125 : f32
    %39 = vector.broadcast %cst_13 : f32 to vector<4x1xf32>
    %40 = arith.mulf %30, %39 : vector<4x1xf32>
    %41 = arith.subf %24, %30 : vector<4x1xf32>
    %cst_14 = arith.constant 0.001953125 : f32
    %42 = vector.broadcast %cst_14 : f32 to vector<4x1xf32>
    %43 = arith.mulf %41, %42 : vector<4x1xf32>
    %cst_15 = arith.constant 0.001953125 : f32
    %44 = vector.broadcast %cst_15 : f32 to vector<4x1xf32>
    %45 = arith.mulf %38, %44 : vector<4x1xf32>
    %46 = arith.mulf %40, %40 : vector<4x1xf32>
    %47 = arith.subf %45, %46 : vector<4x1xf32>
    %cst_16 = arith.constant 0.000000e+00 : f32
    %48 = vector.broadcast %cst_16 : f32 to vector<4x1xf32>
    %49 = arith.maximumf %47, %48 : vector<4x1xf32>
    %50 = arith.subf %32, %38 : vector<4x1xf32>
    %cst_17 = arith.constant 0.001953125 : f32
    %51 = vector.broadcast %cst_17 : f32 to vector<4x1xf32>
    %52 = arith.mulf %50, %51 : vector<4x1xf32>
    %53 = arith.mulf %43, %43 : vector<4x1xf32>
    %54 = arith.subf %52, %53 : vector<4x1xf32>
    %cst_18 = arith.constant 0.000000e+00 : f32
    %55 = vector.broadcast %cst_18 : f32 to vector<4x1xf32>
    %56 = arith.maximumf %54, %55 : vector<4x1xf32>
    %c0_19 = arith.constant 0 : index
    %c0_20 = arith.constant 0 : index
    %57 = vector.load %arg2[%c0_19, %c0_20] : memref<4x2xf32, #tpu.memory_space<vmem>>, vector<4x2xf32>
    %c0_21 = arith.constant 0 : index
    %c0_22 = arith.constant 0 : index
    %58 = vector.load %arg3[%c0_21, %c0_22] : memref<4x2xf32, #tpu.memory_space<vmem>>, vector<4x2xf32>
    %cst_23 = arith.constant 9.99999974E-6 : f32
    %59 = vector.broadcast %cst_23 : f32 to vector<4x1xf32>
    %60 = arith.addf %49, %59 : vector<4x1xf32>
    %61 = math.rsqrt %60 : vector<4x1xf32>
    %62 = vector.extract_strided_slice %57 {offsets = [0, 0], sizes = [4, 1], strides = [1, 1]} : vector<4x2xf32> to vector<4x1xf32>
    %63 = arith.mulf %61, %62 : vector<4x1xf32>
    %cst_24 = arith.constant 9.99999974E-6 : f32
    %64 = vector.broadcast %cst_24 : f32 to vector<4x1xf32>
    %65 = arith.addf %56, %64 : vector<4x1xf32>
    %66 = math.rsqrt %65 : vector<4x1xf32>
    %67 = vector.extract_strided_slice %57 {offsets = [0, 1], sizes = [4, 1], strides = [1, 1]} : vector<4x2xf32> to vector<4x1xf32>
    %68 = arith.mulf %66, %67 : vector<4x1xf32>
    %69 = vector.extract_strided_slice %58 {offsets = [0, 0], sizes = [4, 1], strides = [1, 1]} : vector<4x2xf32> to vector<4x1xf32>
    %70 = arith.mulf %40, %63 : vector<4x1xf32>
    %71 = arith.subf %69, %70 : vector<4x1xf32>
    %72 = vector.extract_strided_slice %58 {offsets = [0, 1], sizes = [4, 1], strides = [1, 1]} : vector<4x2xf32> to vector<4x1xf32>
    %73 = arith.mulf %43, %68 : vector<4x1xf32>
    %74 = arith.subf %72, %73 : vector<4x1xf32>
    %75 = vector.shape_cast %22 : vector<1x512xi1> to vector<1x1x512xi1>
    %76 = vector.shape_cast %63 : vector<4x1xf32> to vector<1x4x1xf32>
    %77 = vector.shape_cast %68 : vector<4x1xf32> to vector<1x4x1xf32>
    %78 = vector.shape_cast %75 : vector<1x1x512xi1> to vector<1x1x512xi1>
    %79 = vector.broadcast %78 : vector<1x1x512xi1> to vector<1x4x512xi1>
    %80 = vector.shape_cast %76 : vector<1x4x1xf32> to vector<1x4x1xf32>
    %81 = vector.broadcast %80 : vector<1x4x1xf32> to vector<1x4x512xf32>
    %82 = vector.shape_cast %77 : vector<1x4x1xf32> to vector<1x4x1xf32>
    %83 = vector.broadcast %82 : vector<1x4x1xf32> to vector<1x4x512xf32>
    %84 = arith.select %79, %81, %83 : vector<1x4x512xi1>, vector<1x4x512xf32>
    %85 = vector.shape_cast %71 : vector<4x1xf32> to vector<1x4x1xf32>
    %86 = vector.shape_cast %74 : vector<4x1xf32> to vector<1x4x1xf32>
    %87 = vector.shape_cast %75 : vector<1x1x512xi1> to vector<1x1x512xi1>
    %88 = vector.broadcast %87 : vector<1x1x512xi1> to vector<1x4x512xi1>
    %89 = vector.shape_cast %85 : vector<1x4x1xf32> to vector<1x4x1xf32>
    %90 = vector.broadcast %89 : vector<1x4x1xf32> to vector<1x4x512xf32>
    %91 = vector.shape_cast %86 : vector<1x4x1xf32> to vector<1x4x1xf32>
    %92 = vector.broadcast %91 : vector<1x4x1xf32> to vector<1x4x512xf32>
    %93 = arith.select %88, %90, %92 : vector<1x4x512xi1>, vector<1x4x512xf32>
    %94 = vector.broadcast %84 : vector<1x4x512xf32> to vector<2x4x512xf32>
    %95 = arith.mulf %0, %94 : vector<2x4x512xf32>
    %96 = vector.broadcast %93 : vector<1x4x512xf32> to vector<2x4x512xf32>
    %97 = arith.addf %95, %96 : vector<2x4x512xf32>
    %c0_25 = arith.constant 0 : index
    %c0_26 = arith.constant 0 : index
    %c0_27 = arith.constant 0 : index
    %98 = vector.load %arg4[%c0_25, %c0_26, %c0_27] : memref<2x4x512xf32, #tpu.memory_space<vmem>>, vector<2x4x512xf32>
    tpu.vector_store %arg4[%c0_25, %c0_26, %c0_27], %97 {strides = array<i32>} : memref<2x4x512xf32, #tpu.memory_space<vmem>>, vector<2x4x512xf32>,
    return
  }
  func.func @transform_0(%arg0: i32) -> (i32, i32, i32) {
    %c0_i32 = arith.constant 0 : i32
    %c0_i32_0 = arith.constant 0 : i32
    %c0_i32_1 = arith.constant 0 : i32
    return %c0_i32, %arg0, %c0_i32_0 : i32, i32, i32
  }
  func.func @transform_1(%arg0: i32) -> (i32, i32) {
    %c0_i32 = arith.constant 0 : i32
    %c0_i32_0 = arith.constant 0 : i32
    return %arg0, %c0_i32 : i32, i32
  }
  func.func @transform_2(%arg0: i32) -> (i32, i32) {
    %c0_i32 = arith.constant 0 : i32
    %c0_i32_0 = arith.constant 0 : i32
    return %arg0, %c0_i32 : i32, i32
  }
  func.func @transform_3(%arg0: i32) -> (i32, i32, i32) {
    %c0_i32 = arith.constant 0 : i32
    %c0_i32_0 = arith.constant 0 : i32
    %c0_i32_1 = arith.constant 0 : i32
    return %c0_i32, %arg0, %c0_i32_0 : i32, i32, i32
  }
}

</mosaic_0001>

<llo_original>
// kernel: tpu_custom_call.1
$region0: #{tpu_custom_call.1}
  #allocation0 [shape = 'u32[]', space=smem, size = 0x4, offset = 0x4, fixed_abs, tag = 'smem constant byte address 0x4 - core index']
  #allocation1 [shape = 'u32[144,128]{1,0:T(1,128)}', space=vmem, size = 0x12000, scoped, tag = 'internal scratch']
  %s0 = inlined_call_operand.hbm [shape: f32[2,4,512], index: 0, kind: input, shape index: {}]
  %s1 = inlined_call_operand.vmem [shape: f32[4,2], index: 1, kind: input, shape index: {}]
  %s2 = inlined_call_operand.vmem [shape: f32[4,2], index: 2, kind: input, shape index: {}]
  %s3 = inlined_call_operand.hbm [shape: f32[2,4,512], index: 3, kind: output, shape index: {}]
  %s4 = sld [smem:[#allocation0]]
  $region26: #{tpu_custom_call.1} parent=0
    _
  %s6 = ssub.s32 1, %s4
  %s7 = scalar_select 0, %s6, %s4
  $region1: #{tpu_custom_call.1} parent=0
    #allocation2 [shape = 'u8[16384]{0}', space=vmem, size = 0x4000, scoped, tag = 'input window, operand 0, single buffered']
    #allocation3 [shape = 's32[1]{0}', space=sflag, size = 0x4, scoped, tag = 'scoped memory for tpu_custom_call.1']
    #allocation4 [shape = 's32[1]{0}', space=sflag, size = 0x4, scoped, tag = 'scoped memory for tpu_custom_call.1']
    #allocation5 [shape = 'u8[16384]{0}', space=vmem, size = 0x4000, scoped, tag = 'output window, operand 0, single buffered']
    %8 = vsyncpa [#allocation3], 0
    %9 = vsyncpa [#allocation4], 0
    // Predicated region
    $region2: #{tpu_custom_call.1} parent=1 // pred_check
      _
    $region3: #{tpu_custom_call.1} parent=1 // pred_check_branch
      %11 = sbr.rel (0) target = $region5
    $region4: #{tpu_custom_call.1} parent=1 // pred_region
      %s13 = ssub.s32 512, 512
      %14 = vsyncadd [#allocation3], %s13
      %s15 = sshll.u32 [#allocation2], 4
      %s16 = int_to_ptr.vmem [resolvable:$true] %s15
      %21 = dma.hbm_to_vmem [thread:$0]  %s0, 512, %s16, [#allocation3], 256, 256, 16
    $region5: #{tpu_custom_call.1} parent=1 // pred_fallthru
      _
    // Predicated region
    $region6: #{tpu_custom_call.1} parent=1 // pred_check
      _
    $region7: #{tpu_custom_call.1} parent=1 // pred_check_branch
      %23 = sbr.rel (0) target = $region9
    $region8: #{tpu_custom_call.1} parent=1 // pred_region
      _
    $region9: #{tpu_custom_call.1} parent=1 // pred_fallthru
      _
    // Predicated region
    $region10: #{tpu_custom_call.1} parent=1 // pred_check
      _
    $region11: #{tpu_custom_call.1} parent=1 // pred_check_branch
      %25 = sbr.rel (0) target = $region13
    $region12: #{tpu_custom_call.1} parent=1 // pred_region
      _
    $region13: #{tpu_custom_call.1} parent=1 // pred_fallthru
      _
    // Predicated region
    $region14: #{tpu_custom_call.1} parent=1 // pred_check
      _
    $region15: #{tpu_custom_call.1} parent=1 // pred_check_branch
      %27 = sbr.rel (0) target = $region17
    $region16: #{tpu_custom_call.1} parent=1 // pred_region
      %28 = dma.done [#allocation3], 512
    $region17: #{tpu_custom_call.1} parent=1 // pred_fallthru
      _
    %v29 = vld [vmem:[#allocation2] sm:$0xff]
    %v30 = vld [vmem:[#allocation2 + $0x8] sm:$0xff]
    %v31 = vld [vmem:[#allocation2 + $0x10] sm:$0xff]
    %v32 = vld [vmem:[#allocation2 + $0x18] sm:$0xff]
    %v37 = vcombine.high %v29, %v29
    %v38 = vcombine.high %v30, %v30
    %v39 = vcombine.high %v31, %v31
    %v40 = vcombine.high %v32, %v32
    %vm45 = vcmask 1043456
    %v46 = vsel %vm45, %v29, 0.0
    %v47 = vsel %vm45, %v31, 0.0
    %v48 = vadd.f32 %v46, %v47
    %v49 = vsel %vm45, %v37, 0.0
    %v50 = vsel %vm45, %v39, 0.0
    %v51 = vadd.f32 %v49, %v50
    %v52 = vsel %vm45, %v30, 0.0
    %v53 = vsel %vm45, %v32, 0.0
    %v54 = vadd.f32 %v52, %v53
    %v55 = vsel %vm45, %v38, 0.0
    %v56 = vsel %vm45, %v40, 0.0
    %v57 = vadd.f32 %v55, %v56
    %v58 = vmul.f32 %v29, %v29
    %v59 = vmul.f32 %v30, %v30
    %v60 = vmul.f32 %v31, %v31
    %v61 = vmul.f32 %v32, %v32
    %v66 = vcombine.high %v58, %v58
    %v67 = vcombine.high %v59, %v59
    %v68 = vcombine.high %v60, %v60
    %v69 = vcombine.high %v61, %v61
    %v74 = vsel %vm45, %v58, 0.0
    %v75 = vsel %vm45, %v60, 0.0
    %v76 = vadd.f32 %v74, %v75
    %v77 = vsel %vm45, %v66, 0.0
    %v78 = vsel %vm45, %v68, 0.0
    %v79 = vadd.f32 %v77, %v78
    %v80 = vsel %vm45, %v59, 0.0
    %v81 = vsel %vm45, %v61, 0.0
    %v82 = vadd.f32 %v80, %v81
    %v83 = vsel %vm45, %v67, 0.0
    %v84 = vsel %vm45, %v69, 0.0
    %v85 = vadd.f32 %v83, %v84
    %v86 = vlaneseq
    %v87 = vand.u32 %v86, 127
    %v88 = vadd.s32 %v87, 128
    %v89 = vadd.s32 %v87, 256
    %v90 = vadd.s32 %v87, 384
    %vm91 = vcmp.lt.s32.totalorder %v87, 0
    %v92 = vsub.s32 0, %v87
    %v93 = vsel %vm91, %v92, %v87
    %v94 = vshrl.u32 %v93, 1
    %v95 = vand.u32 %v93, 1
    %v96 = vsub.s32 0, %v95
    %v97 = vsel %vm91, %v96, %v95
    %vm98 = vcmp.lt.s32.totalorder %v88, 0
    %v99 = vsub.s32 0, %v88
    %v100 = vsel %vm98, %v99, %v88
    %v101 = vshrl.u32 %v100, 1
    %v102 = vand.u32 %v100, 1
    %v103 = vsub.s32 0, %v102
    %v104 = vsel %vm98, %v103, %v102
    %vm105 = vcmp.lt.s32.totalorder %v89, 0
    %v106 = vsub.s32 0, %v89
    %v107 = vsel %vm105, %v106, %v89
    %v108 = vshrl.u32 %v107, 1
    %v109 = vand.u32 %v107, 1
    %v110 = vsub.s32 0, %v109
    %v111 = vsel %vm105, %v110, %v109
    %vm112 = vcmp.lt.s32.totalorder %v90, 0
    %v113 = vsub.s32 0, %v90
    %v114 = vsel %vm112, %v113, %v90
    %v115 = vshrl.u32 %v114, 1
    %v116 = vand.u32 %v114, 1
    %v117 = vsub.s32 0, %v116
    %v118 = vsel %vm112, %v117, %v116
    %vm119 = vcmp.ne.s32.totalorder %v97, 0
    %vm120 = vcmp.ne.s32.totalorder %v104, 0
    %vm121 = vcmp.ne.s32.totalorder %v111, 0
    %vm122 = vcmp.ne.s32.totalorder %v118, 0
    %vm123 = vcmp.lt.s32.totalorder %v97, 0
    %vm124 = vcmp.lt.s32.totalorder %v104, 0
    %vm125 = vcmp.lt.s32.totalorder %v111, 0
    %vm126 = vcmp.lt.s32.totalorder %v118, 0
    %vm127 = vmand %vm123, %vm119
    %vm128 = vmand %vm124, %vm120
    %vm129 = vmand %vm125, %vm121
    %vm130 = vmand %vm126, %vm122
    %v131 = vadd.s32 %v97, 2
    %v132 = vadd.s32 %v104, 2
    %v133 = vadd.s32 %v111, 2
    %v134 = vadd.s32 %v118, 2
    %v135 = vsel %vm127, %v131, %v97
    %v136 = vsel %vm128, %v132, %v104
    %v137 = vsel %vm129, %v133, %v111
    %v138 = vsel %vm130, %v134, %v118
    %vm139 = vcmp.eq.s32.totalorder %v135, 0
    %vm140 = vcmp.eq.s32.totalorder %v136, 0
    %vm141 = vcmp.eq.s32.totalorder %v137, 0
    %vm142 = vcmp.eq.s32.totalorder %v138, 0
    %v143 = vsel %vm45, %v48, 0.0
    %v144 = vsel %vm45, %v51, 0.0
    %v145 = vadd.f32 %v143, %v144
    %v146 = vsel %vm45, %v54, 0.0
    %v147 = vadd.f32 %v145, %v146
    %v148 = vsel %vm45, %v57, 0.0
    %v149 = vadd.f32 %v147, %v148
    %150 = vadd.xlane.f32.xlu0 %v149
    %v151 = vpop.xlane.xlu0 %150
    %v152 = vsel %vm139, 1, 0
    %v153 = vsel %vm140, 1, 0
    %v154 = vsel %vm141, 1, 0
    %v155 = vsel %vm142, 1, 0
    %vm156 = vcmp.eq.s32.totalorder %v152, 1
    %vm157 = vcmp.eq.s32.totalorder %v153, 1
    %vm158 = vcmp.eq.s32.totalorder %v154, 1
    %vm159 = vcmp.eq.s32.totalorder %v155, 1
    %v160 = vsel %vm156, %v48, 0.0
    %v161 = vsel %vm157, %v51, 0.0
    %v162 = vsel %vm158, %v54, 0.0
    %v163 = vsel %vm159, %v57, 0.0
    %v164 = vsel %vm45, %v160, 0.0
    %v165 = vsel %vm45, %v161, 0.0
    %v166 = vadd.f32 %v164, %v165
    %v167 = vsel %vm45, %v162, 0.0
    %v168 = vadd.f32 %v166, %v167
    %v169 = vsel %vm45, %v163, 0.0
    %v170 = vadd.f32 %v168, %v169
    %171 = vadd.xlane.f32.xlu0 %v170
    %v172 = vpop.xlane.xlu0 %171
    %v173 = vsel %vm45, %v76, 0.0
    %v174 = vsel %vm45, %v79, 0.0
    %v175 = vadd.f32 %v173, %v174
    %v176 = vsel %vm45, %v82, 0.0
    %v177 = vadd.f32 %v175, %v176
    %v178 = vsel %vm45, %v85, 0.0
    %v179 = vadd.f32 %v177, %v178
    %180 = vadd.xlane.f32.xlu0 %v179
    %v181 = vpop.xlane.xlu0 %180
    %v182 = vsel %vm156, %v76, 0.0
    %v183 = vsel %vm157, %v79, 0.0
    %v184 = vsel %vm158, %v82, 0.0
    %v185 = vsel %vm159, %v85, 0.0
    %v186 = vsel %vm45, %v182, 0.0
    %v187 = vsel %vm45, %v183, 0.0
    %v188 = vadd.f32 %v186, %v187
    %v189 = vsel %vm45, %v184, 0.0
    %v190 = vadd.f32 %v188, %v189
    %v191 = vsel %vm45, %v185, 0.0
    %v192 = vadd.f32 %v190, %v191
    %193 = vadd.xlane.f32.xlu0 %v192
    %v194 = vpop.xlane.xlu0 %193
    %v195 = vmul.f32 %v172, 0.001953125
    %v196 = vsub.f32 %v151, %v172
    %v197 = vmul.f32 %v196, 0.001953125
    %v198 = vmul.f32 %v194, 0.001953125
    %v199 = vmul.f32 %v195, %v195
    %v200 = vsub.f32 %v198, %v199
    %v201 = vmax.f32 %v200, 0.0
    %v202 = vsub.f32 %v181, %v194
    %v203 = vmul.f32 %v202, 0.001953125
    %v204 = vmul.f32 %v197, %v197
    %v205 = vsub.f32 %v203, %v204
    %v206 = vmax.f32 %v205, 0.0
    %v207 = vld [vmem:[%s1] sm:$0xf]
    %v208 = vld [vmem:[%s2] sm:$0xf]
    %v209 = vadd.f32 %v201, 1e-05
    %v210 = vrsqrt.pop %v209
    %v211 = vmul.f32 %v210, %v207
    %v212 = vadd.f32 %v206, 1e-05
    %v213 = vrsqrt.pop %v212
    %v214 = vmul.f32 %v213, %v207
    %v215 = vmul.f32 %v195, %v211
    %v216 = vsub.f32 %v208, %v215
    %v217 = vmul.f32 %v197, %v214
    %v218 = vsub.f32 %v208, %v217
    %220 = vset.pattern.permute.xlu0 0
    %221 = vperm.xlu0 %220, %v211
    %v222 = vpop.permute.xlu0 %221
    %225 = vset.pattern.permute.xlu0 1
    %226 = vperm.xlu0 %225, %v214
    %v227 = vpop.permute.xlu0 %226
    %v229 = vsel %vm156, %v222, %v227
    %v230 = vsel %vm157, %v222, %v227
    %v231 = vsel %vm158, %v222, %v227
    %v232 = vsel %vm159, %v222, %v227
    %234 = vset.pattern.permute.xlu0 0
    %235 = vperm.xlu0 %234, %v216
    %v236 = vpop.permute.xlu0 %235
    %239 = vset.pattern.permute.xlu0 1
    %240 = vperm.xlu0 %239, %v218
    %v241 = vpop.permute.xlu0 %240
    %v243 = vsel %vm156, %v236, %v241
    %v244 = vsel %vm157, %v236, %v241
    %v245 = vsel %vm158, %v236, %v241
    %v246 = vsel %vm159, %v236, %v241
    %v251 = vcombine.low %v229, %v230
    %v252 = vcombine.low %v231, %v232
    %v255 = vmul.f32 %v29, %v251
    %v256 = vmul.f32 %v30, %v252
    %v257 = vmul.f32 %v31, %v251
    %v258 = vmul.f32 %v32, %v252
    %v263 = vcombine.low %v243, %v244
    %v264 = vcombine.low %v245, %v246
    %v267 = vadd.f32 %v255, %v263
    %v268 = vadd.f32 %v256, %v264
    %v269 = vadd.f32 %v257, %v263
    %v270 = vadd.f32 %v258, %v264
    %271 = vst [vmem:[#allocation5] sm:$0xff] %v267
    %272 = vst [vmem:[#allocation5 + $0x8] sm:$0xff] %v268
    %273 = vst [vmem:[#allocation5 + $0x10] sm:$0xff] %v269
    %274 = vst [vmem:[#allocation5 + $0x18] sm:$0xff] %v270
    // Predicated region
    $region18: #{tpu_custom_call.1} parent=1 // pred_check
      _
    $region19: #{tpu_custom_call.1} parent=1 // pred_check_branch
      %276 = sbr.rel (0) target = $region21
    $region20: #{tpu_custom_call.1} parent=1 // pred_region
      %s278 = ssub.s32 512, 512
      %279 = vsyncadd [#allocation4], %s278
      %s280 = sshll.u32 [#allocation5], 4
      %s281 = int_to_ptr.vmem [resolvable:$true] %s280
      %286 = dma.vmem_to_hbm [thread:$0]  %s281, 512, %s3, [#allocation4], 256, 256, 16
    $region21: #{tpu_custom_call.1} parent=1 // pred_fallthru
      _
    // Predicated region
    $region22: #{tpu_custom_call.1} parent=1 // pred_check
      _
    $region23: #{tpu_custom_call.1} parent=1 // pred_check_branch
      %288 = sbr.rel (0) target = $region25
    $region24: #{tpu_custom_call.1} parent=1 // pred_region
      %289 = dma.done [#allocation4], 512
    $region25: #{tpu_custom_call.1} parent=1 // pred_fallthru
      _
    %290 = vsyncpa [#allocation3], 1
    %291 = vsyncpa [#allocation4], 1

</llo_original>
